<compile_context>
chip_gen: v5e
topology: v5e:2x2
jax: 0.10.0
libtpu: 0.0.40
codegen_flags: <defaults>
</compile_context>

<pallas_src>
import jax
import jax.numpy as jnp
from jax.experimental import pallas as pl
from jax.experimental.pallas import tpu as pltpu


def _round_up(n: int, m: int) -> int:
    return ((n + m - 1) // m) * m


def encoder_kernel(x_ref, wf_ref, bf_ref, wh_ref, bh_ref, out_ref):
    # Hidden layer: h = relu(x @ Wf + bf).  MXU matmul accumulates in f32;
    # bias add + ReLU stay in f32 (v5e has no bf16 VPU).
    x = x_ref[...]
    h = jnp.dot(x, wf_ref[...], preferred_element_type=jnp.float32)
    h = jnp.maximum(h + bf_ref[...], 0.0)          # bf (1, HP) broadcasts over TB

    # Fused heads: one matmul against [HP, NP] (= [Wmu | Wls | zero-pad]).
    o = jnp.dot(h.astype(wh_ref.dtype), wh_ref[...],
                preferred_element_type=jnp.float32)
    out_ref[...] = (o + bh_ref[...]).astype(out_ref.dtype)   # lane-dense store


def pack_encoder_params(wf, bf, wmu, bmu, wls, bls, dtype=None):
    """Fuse heads + pad ONCE (not per forward call).

    Pads:
      * hidden dim H -> HP (multiple of 128): Wf output cols, bf, Wh rows,
      * fused-head width 2M -> NP (multiple of 128): Wh cols, bh.
    All padding is zeros, so results are exact.

    Returns (wf[D,HP], bf[1,HP], w_heads[HP,NP], b_heads[1,NP], M).
    """
    if dtype is not None:
        wf, bf, wmu, bmu, wls, bls = (a.astype(dtype)
                                      for a in (wf, bf, wmu, bmu, wls, bls))
    D, H = wf.shape
    M = wmu.shape[1]

    # --- pad hidden dim H -> HP (multiple of 128) ---------------------------
    HP = _round_up(max(H, 128), 128)
    if HP > H:
        wf = jnp.pad(wf, ((0, 0), (0, HP - H)))
        bf = jnp.pad(bf.reshape(1, -1), ((0, 0), (0, HP - H)))
        wmu = jnp.pad(wmu, ((0, HP - H), (0, 0)))
        wls = jnp.pad(wls, ((0, HP - H), (0, 0)))
    else:
        bf = bf.reshape(1, -1)

    # --- fuse heads and pad 2M -> NP (multiple of 128) -----------------------
    wh = jnp.concatenate([wmu, wls], axis=1)                       # [HP, 2M]
    bh = jnp.concatenate([bmu.reshape(1, -1), bls.reshape(1, -1)], axis=1)
    out_w = 2 * M
    NP = _round_up(max(out_w, 128), 128)
    if NP > out_w:
        wh = jnp.pad(wh, ((0, 0), (0, NP - out_w)))
        bh = jnp.pad(bh, ((0, 0), (0, NP - out_w)))
    return wf, bf, wh, bh, M


def _choose_batch_tile(B, tb_max=2048):
    """Pick a sublane-aligned batch tile.

    - TB <= tb_max (big contiguous DMAs, few grid steps),
    - when B >= 256, force >= 2 grid steps so both v7x TensorCores get work,
    - TB ~= round_up(cdiv(B, n_steps), 8) so batch padding stays within a few
      sublane rows per step (no round_up(B, TB) blowup).
    """
    B8 = _round_up(B, 8)
    n_steps = pl.cdiv(B8, tb_max)
    if B >= 256:
        n_steps = max(n_steps, 2)        # megacore split on v7x
    return _round_up(pl.cdiv(B8, n_steps), 8)


def encoder_forward(x, packed_params):
    """x: [B, D]; returns (mu [B, M], log_sigma_squared [B, M])."""
    wf, bf, wh, bh, M = packed_params
    B, D = x.shape
    HP = wf.shape[1]
    NP = wh.shape[1]

    x = x.astype(wf.dtype)               # bf16 streams if params packed bf16

    TB = _choose_batch_tile(B)
    B_pad = _round_up(B, TB)
    if B_pad != B:
        x = jnp.pad(x, ((0, B_pad - B), (0, 0)))
    nb = B_pad // TB

    itemsize = jnp.dtype(x.dtype).itemsize
    w_itemsize = jnp.dtype(wf.dtype).itemsize
    flops = 2 * B_pad * (D * HP + HP * NP)
    bytes_accessed = int(
        B_pad * D * itemsize
        + (wf.size + bf.size + wh.size + bh.size) * w_itemsize
        + B_pad * NP * itemsize)

    # Double-buffered x/out tiles + resident weights; only override the scoped
    # VMEM limit if we would exceed the smallest default (v5e: 16 MiB).
    vmem_need = (2 * (TB * D + TB * NP) * itemsize
                 + (D * HP + HP + HP * NP + NP) * w_itemsize)
    vmem_limit = None
    if vmem_need > 12 * 1024 * 1024:
        vmem_limit = min(int(vmem_need * 2) + (2 << 20), 64 * 1024 * 1024)

    out = pl.pallas_call(
        encoder_kernel,
        out_shape=jax.ShapeDtypeStruct((B_pad, NP), x.dtype),
        grid=(nb,),
        in_specs=[
            pl.BlockSpec((TB, D), lambda i: (i, 0)),    # x: tiled over batch
            pl.BlockSpec((D, HP), lambda i: (0, 0)),    # Wf: VMEM-resident
            pl.BlockSpec((1, HP), lambda i: (0, 0)),    # bf
            pl.BlockSpec((HP, NP), lambda i: (0, 0)),   # fused/padded head W
            pl.BlockSpec((1, NP), lambda i: (0, 0)),    # fused/padded head b
        ],
        out_specs=pl.BlockSpec((TB, NP), lambda i: (i, 0)),
        compiler_params=pltpu.CompilerParams(
            dimension_semantics=("parallel",),          # megacore split on v7x
            vmem_limit_bytes=vmem_limit),
        cost_estimate=pl.CostEstimate(
            flops=flops, transcendentals=0, bytes_accessed=bytes_accessed),
    )(x, wf, bf, wh, bh)

    mu = out[:B, :M]
    log_sigma_sq = out[:B, M:2 * M]
    return mu, log_sigma_sq


def init_encoder_params(key, input_dim, hidden_dim, latent_dim, dtype=jnp.float32):
    """Deterministic init mimicking torch.nn.Linear (uniform +-1/sqrt(fan_in)).
    Weights stored [in, out] (transposed vs torch's [out, in])."""
    ks = jax.random.split(key, 6)

    def linear(kw, kb, fan_in, fan_out):
        bound = 1.0 / jnp.sqrt(fan_in)
        w = jax.random.uniform(kw, (fan_in, fan_out), dtype, -bound, bound)
        b = jax.random.uniform(kb, (1, fan_out), dtype, -bound, bound)
        return w, b

    wf, bf = linear(ks[0], ks[1], input_dim, hidden_dim)
    wmu, bmu = linear(ks[2], ks[3], hidden_dim, latent_dim)
    wls, bls = linear(ks[4], ks[5], hidden_dim, latent_dim)
    return wf, bf, wmu, bmu, wls, bls


def _reference(x, raw_params):
    wf, bf, wmu, bmu, wls, bls = raw_params
    h = jnp.maximum(x @ wf + bf, 0.0)
    return h @ wmu + bmu, h @ wls + bls


if __name__ == "__main__":
    B, D, H, M = 8, 32, 64, 16  # batch, input_dim, hidden_dim, latent_dim

    key = jax.random.PRNGKey(0)
    kx, kp, kx2 = jax.random.split(key, 3)

    x = jax.random.normal(kx, (B, D), dtype=jnp.float32)
    raw_params = init_encoder_params(kp, D, H, M)

    # ---- f32 path (tight tolerance) ----------------------------------------
    packed_f32 = pack_encoder_params(*raw_params)              # one-time fuse/pad
    mu, log_sigma_sq = encoder_forward(x, packed_f32)
    jax.block_until_ready((mu, log_sigma_sq))

    mu_ref, ls_ref = _reference(x, raw_params)
    assert mu.shape == (B, M) and log_sigma_sq.shape == (B, M)
    assert jnp.allclose(mu, mu_ref, atol=1e-5), "mu mismatch (f32)"
    assert jnp.allclose(log_sigma_sq, ls_ref, atol=1e-5), "log_sigma_sq mismatch (f32)"

    # ---- multi-step grid path (exercises TB selection + batch padding) -----
    B2 = 530
    x2 = jax.random.normal(kx2, (B2, D), dtype=jnp.float32)
    mu2, ls2 = encoder_forward(x2, packed_f32)
    jax.block_until_ready((mu2, ls2))
    mu2_ref, ls2_ref = _reference(x2, raw_params)
    assert mu2.shape == (B2, M) and ls2.shape == (B2, M)
    assert jnp.allclose(mu2, mu2_ref, atol=1e-5), "mu mismatch (grid>1)"
    assert jnp.allclose(ls2, ls2_ref, atol=1e-5), "log_sigma_sq mismatch (grid>1)"

    # ---- bf16 storage path (loose relative tolerance) -----------------------
    packed_bf16 = pack_encoder_params(*raw_params, dtype=jnp.bfloat16)
    mu_b, ls_b = encoder_forward(x, packed_bf16)
    jax.block_until_ready((mu_b, ls_b))
    assert jnp.allclose(mu_b.astype(jnp.float32), mu_ref, rtol=2e-2, atol=2e-2), \
        "mu mismatch (bf16)"
    assert jnp.allclose(ls_b.astype(jnp.float32), ls_ref, rtol=2e-2, atol=2e-2), \
        "log_sigma_sq mismatch (bf16)"

    print("KERNEL_OK")
</pallas_src>

<mosaic_0001>
module attributes {stable_mosaic.version = 11 : i64} {
  func.func @encoder_kernel(%arg0: i32, %arg1: memref<8x32xf32, #tpu.memory_space<vmem>>, %arg2: memref<32x128xf32, #tpu.memory_space<vmem>>, %arg3: memref<1x128xf32, #tpu.memory_space<vmem>>, %arg4: memref<128x128xf32, #tpu.memory_space<vmem>>, %arg5: memref<1x128xf32, #tpu.memory_space<vmem>>, %arg6: memref<8x128xf32, #tpu.memory_space<vmem>>) attributes {dimension_semantics = [#tpu.dimension_semantics<parallel>], iteration_bounds = array<i64: 1>, scalar_prefetch = 0 : i64, scratch_operands = 0 : i64, tpu.core_type = #tpu.core_type<tc>, window_params = [{transform_indices = @transform_0, window_bounds = array<i64: 8, 32>}, {pipeline_mode = #tpu.pipeline_mode<synchronous>, transform_indices = @transform_1, window_bounds = array<i64: 32, 128>}, {pipeline_mode = #tpu.pipeline_mode<synchronous>, transform_indices = @transform_2, window_bounds = array<i64: 1, 128>}, {pipeline_mode = #tpu.pipeline_mode<synchronous>, transform_indices = @transform_3, window_bounds = array<i64: 128, 128>}, {pipeline_mode = #tpu.pipeline_mode<synchronous>, transform_indices = @transform_4, window_bounds = array<i64: 1, 128>}, {transform_indices = @transform_5, window_bounds = array<i64: 8, 128>}]} {
    %c0 = arith.constant 0 : index
    %c0_0 = arith.constant 0 : index
    %0 = vector.load %arg1[%c0, %c0_0] : memref<8x32xf32, #tpu.memory_space<vmem>>, vector<8x32xf32>
    %c0_1 = arith.constant 0 : index
    %c0_2 = arith.constant 0 : index
    %1 = vector.load %arg2[%c0_1, %c0_2] : memref<32x128xf32, #tpu.memory_space<vmem>>, vector<32x128xf32>
    %cst = arith.constant dense<0.000000e+00> : vector<8x128xf32>
    %2 = tpu.matmul %0, %1, %cst {dimension_numbers = #tpu.dot_dimension_numbers<[1], [0], [0], [1], [0, 0, 1, 1], [], []>} : vector<8x32xf32>, vector<32x128xf32>, vector<8x128xf32> -> vector<8x128xf32>
    %c0_3 = arith.constant 0 : index
    %c0_4 = arith.constant 0 : index
    %3 = vector.load %arg3[%c0_3, %c0_4] : memref<1x128xf32, #tpu.memory_space<vmem>>, vector<1x128xf32>
    %4 = vector.broadcast %3 : vector<1x128xf32> to vector<8x128xf32>
    %5 = arith.addf %2, %4 : vector<8x128xf32>
    %cst_5 = arith.constant 0.000000e+00 : f32
    %6 = vector.broadcast %cst_5 : f32 to vector<8x128xf32>
    %7 = arith.maximumf %5, %6 : vector<8x128xf32>
    %c0_6 = arith.constant 0 : index
    %c0_7 = arith.constant 0 : index
    %8 = vector.load %arg4[%c0_6, %c0_7] : memref<128x128xf32, #tpu.memory_space<vmem>>, vector<128x128xf32>
    %cst_8 = arith.constant dense<0.000000e+00> : vector<8x128xf32>
    %9 = tpu.matmul %7, %8, %cst_8 {dimension_numbers = #tpu.dot_dimension_numbers<[1], [0], [0], [1], [0, 0, 1, 1], [], []>} : vector<8x128xf32>, vector<128x128xf32>, vector<8x128xf32> -> vector<8x128xf32>
    %c0_9 = arith.constant 0 : index
    %c0_10 = arith.constant 0 : index
    %10 = vector.load %arg5[%c0_9, %c0_10] : memref<1x128xf32, #tpu.memory_space<vmem>>, vector<1x128xf32>
    %11 = vector.broadcast %10 : vector<1x128xf32> to vector<8x128xf32>
    %12 = arith.addf %9, %11 : vector<8x128xf32>
    %c0_11 = arith.constant 0 : index
    %c0_12 = arith.constant 0 : index
    %13 = vector.load %arg6[%c0_11, %c0_12] : memref<8x128xf32, #tpu.memory_space<vmem>>, vector<8x128xf32>
    tpu.vector_store %arg6[%c0_11, %c0_12], %12 {strides = array<i32>} : memref<8x128xf32, #tpu.memory_space<vmem>>, vector<8x128xf32>,
    return
  }
  func.func @transform_0(%arg0: i32) -> (i32, i32) {
    %c0_i32 = arith.constant 0 : i32
    %c0_i32_0 = arith.constant 0 : i32
    return %arg0, %c0_i32 : i32, i32
  }
  func.func @transform_1(%arg0: i32) -> (i32, i32) {
    %c0_i32 = arith.constant 0 : i32
    %c0_i32_0 = arith.constant 0 : i32
    %c0_i32_1 = arith.constant 0 : i32
    return %c0_i32, %c0_i32_0 : i32, i32
  }
  func.func @transform_2(%arg0: i32) -> (i32, i32) {
    %c0_i32 = arith.constant 0 : i32
    %c0_i32_0 = arith.constant 0 : i32
    %c0_i32_1 = arith.constant 0 : i32
    return %c0_i32, %c0_i32_0 : i32, i32
  }
  func.func @transform_3(%arg0: i32) -> (i32, i32) {
    %c0_i32 = arith.constant 0 : i32
    %c0_i32_0 = arith.constant 0 : i32
    %c0_i32_1 = arith.constant 0 : i32
    return %c0_i32, %c0_i32_0 : i32, i32
  }
  func.func @transform_4(%arg0: i32) -> (i32, i32) {
    %c0_i32 = arith.constant 0 : i32
    %c0_i32_0 = arith.constant 0 : i32
    %c0_i32_1 = arith.constant 0 : i32
    return %c0_i32, %c0_i32_0 : i32, i32
  }
  func.func @transform_5(%arg0: i32) -> (i32, i32) {
    %c0_i32 = arith.constant 0 : i32
    %c0_i32_0 = arith.constant 0 : i32
    return %arg0, %c0_i32 : i32, i32
  }
}

</mosaic_0001>

<llo_original>
// kernel: tpu_custom_call.1
$region0: #{tpu_custom_call.1}
  #allocation0 [shape = 'u32[]', space=smem, size = 0x4, offset = 0x4, fixed_abs, tag = 'smem constant byte address 0x4 - core index']
  #allocation1 [shape = 'u32[72,128]{1,0:T(1,128)}', space=vmem, size = 0x9000, scoped, tag = 'internal scratch']
  %s0 = inlined_call_operand.hbm [shape: f32[8,32], index: 0, kind: input, shape index: {}]
  %s1 = inlined_call_operand.hbm [shape: f32[32,128], index: 1, kind: input, shape index: {}]
  %s2 = inlined_call_operand.vmem [shape: f32[1,128], index: 2, kind: input, shape index: {}]
  %s3 = inlined_call_operand.hbm [shape: f32[128,128], index: 3, kind: input, shape index: {}]
  %s4 = inlined_call_operand.vmem [shape: f32[1,128], index: 4, kind: input, shape index: {}]
  %s5 = inlined_call_operand.hbm [shape: f32[8,128], index: 5, kind: output, shape index: {}]
  %s6 = sld [smem:[#allocation0]]
  $region42: #{tpu_custom_call.1} parent=0
    _
  %s8 = ssub.s32 1, %s6
  %s9 = scalar_select 0, %s8, %s6
  $region1: #{tpu_custom_call.1} parent=0
    #allocation2 [shape = 'u8[4096]{0}', space=vmem, size = 0x1000, scoped, tag = 'input window, operand 0, single buffered']
    #allocation3 [shape = 's32[1]{0}', space=sflag, size = 0x4, scoped, tag = 'scoped memory for tpu_custom_call.1']
    #allocation4 [shape = 's32[1]{0}', space=sflag, size = 0x4, scoped, tag = 'scoped memory for tpu_custom_call.1']
    #allocation5 [shape = 'u8[16384]{0}', space=vmem, size = 0x4000, scoped, tag = 'input window, operand 1, single buffered']
    #allocation6 [shape = 's32[1]{0}', space=sflag, size = 0x4, scoped, tag = 'scoped memory for tpu_custom_call.1']
    #allocation7 [shape = 'u8[65536]{0}', space=vmem, size = 0x10000, scoped, tag = 'input window, operand 3, single buffered']
    #allocation8 [shape = 'u8[4096]{0}', space=vmem, size = 0x1000, scoped, tag = 'output window, operand 0, single buffered']
    %10 = vsyncpa [#allocation3], 0
    %11 = vsyncpa [#allocation6], 0
    %12 = vsyncpa [#allocation4], 0
    // Predicated region
    $region2: #{tpu_custom_call.1} parent=1 // pred_check
      _
    $region3: #{tpu_custom_call.1} parent=1 // pred_check_branch
      %14 = sbr.rel (0) target = $region5
    $region4: #{tpu_custom_call.1} parent=1 // pred_region
      %16 = vsyncadd [#allocation3], 0
      %s18 = sshll.u32 %s0, 4
      %s19 = int_to_ptr.hbm [resolvable:$true] %s18
      %s20 = sshll.u32 [#allocation2], 4
      %s21 = int_to_ptr.vmem [resolvable:$true] %s20
      %23 = dma.hbm_to_vmem [thread:$0]  %s19, 128, %s21, [#allocation3]
    $region5: #{tpu_custom_call.1} parent=1 // pred_fallthru
      _
    // Predicated region
    $region6: #{tpu_custom_call.1} parent=1 // pred_check
      _
    $region7: #{tpu_custom_call.1} parent=1 // pred_check_branch
      %25 = sbr.rel (0) target = $region9
    $region8: #{tpu_custom_call.1} parent=1 // pred_region
      %27 = vsyncadd [#allocation6], 0
      %s28 = sshll.u32 %s1, 4
      %s29 = int_to_ptr.hbm [resolvable:$true] %s28
      %s30 = sshll.u32 [#allocation5], 4
      %s31 = int_to_ptr.vmem [resolvable:$true] %s30
      %36 = dma.hbm_to_vmem [thread:$0]  %s29, 512, %s31, [#allocation6], 128, 128, 8
    $region9: #{tpu_custom_call.1} parent=1 // pred_fallthru
      _
    // Predicated region
    $region10: #{tpu_custom_call.1} parent=1 // pred_check
      _
    $region11: #{tpu_custom_call.1} parent=1 // pred_check_branch
      %38 = sbr.rel (0) target = $region13
    $region12: #{tpu_custom_call.1} parent=1 // pred_region
      _
    $region13: #{tpu_custom_call.1} parent=1 // pred_fallthru
      _
    // Predicated region
    $region14: #{tpu_custom_call.1} parent=1 // pred_check
      _
    $region15: #{tpu_custom_call.1} parent=1 // pred_check_branch
      %40 = sbr.rel (0) target = $region17
    $region16: #{tpu_custom_call.1} parent=1 // pred_region
      %42 = vsyncadd [#allocation6], 0
      %s43 = sshll.u32 %s3, 4
      %s44 = int_to_ptr.hbm [resolvable:$true] %s43
      %s45 = sshll.u32 [#allocation7], 4
      %s46 = int_to_ptr.vmem [resolvable:$true] %s45
      %51 = dma.hbm_to_vmem [thread:$0]  %s44, 2048, %s46, [#allocation6], 128, 128, 8
    $region17: #{tpu_custom_call.1} parent=1 // pred_fallthru
      _
    // Predicated region
    $region18: #{tpu_custom_call.1} parent=1 // pred_check
      _
    $region19: #{tpu_custom_call.1} parent=1 // pred_check_branch
      %53 = sbr.rel (0) target = $region21
    $region20: #{tpu_custom_call.1} parent=1 // pred_region
      _
    $region21: #{tpu_custom_call.1} parent=1 // pred_fallthru
      _
    // Predicated region
    $region22: #{tpu_custom_call.1} parent=1 // pred_check
      _
    $region23: #{tpu_custom_call.1} parent=1 // pred_check_branch
      %55 = sbr.rel (0) target = $region25
    $region24: #{tpu_custom_call.1} parent=1 // pred_region
      %57 = dma.done [#allocation3], 128
    $region25: #{tpu_custom_call.1} parent=1 // pred_fallthru
      _
    // Predicated region
    $region26: #{tpu_custom_call.1} parent=1 // pred_check
      _
    $region27: #{tpu_custom_call.1} parent=1 // pred_check_branch
      %59 = sbr.rel (0) target = $region29
    $region28: #{tpu_custom_call.1} parent=1 // pred_region
      %61 = dma.done [#allocation6], 512
    $region29: #{tpu_custom_call.1} parent=1 // pred_fallthru
      _
    // Predicated region
    $region30: #{tpu_custom_call.1} parent=1 // pred_check
      _
    $region31: #{tpu_custom_call.1} parent=1 // pred_check_branch
      %63 = sbr.rel (0) target = $region33
    $region32: #{tpu_custom_call.1} parent=1 // pred_region
      %65 = dma.done [#allocation6], 2048
    $region33: #{tpu_custom_call.1} parent=1 // pred_fallthru
      _
    %v66 = vld [vmem:[#allocation2] sm:$0xff]
    %v67 = vld [vmem:[#allocation5] sm:$0xff]
    %v68 = vld [vmem:[#allocation5 + $0x8] sm:$0xff]
    %v69 = vld [vmem:[#allocation5 + $0x10] sm:$0xff]
    %v70 = vld [vmem:[#allocation5 + $0x18] sm:$0xff]
    %v71 = vld [vmem:[%s2] sm:$0x1]
    %v73 = vperm.slane %v71, 0
    %vm75 = vcmask 261120
    %v77 = vsel %vm75, %v66, 0
    %79 = vmatpush.msra.mxu0 0.0
    %80 = vmatpush.msra.mxu0 0.0
    %81 = vmatpush.msra.mxu0 0.0
    %82 = vmatpush.msra.mxu0 0.0
    %83 = vmatpush.msra.mxu0 0.0
    %84 = vmatpush.msra.mxu0 0.0
    %85 = vmatpush.msra.mxu0 0.0
    %86 = vmatpush.msra.mxu0 0.0
    %87 = vmatpush.msra.mxu0 0.0
    %88 = vmatpush.msra.mxu0 0.0
    %89 = vmatpush.msra.mxu0 0.0
    %90 = vmatpush.msra.mxu0 0.0
    %91 = vmatpush.msra.mxu0 %v70
    %92 = vmatpush.msra.mxu0 %v69
    %93 = vmatpush.msra.mxu0 %v68
    %94 = vmatpush.msra.mxu0 %v67
    %95 = vmatmul.f32.gmra.mxu0 %v77
    %v96 = vpop.f32.mrf.mxu0
    %v97 = vadd.f32 %v73, %v96
    %98 = vdwg.mxu0
    %v99 = vmax.f32 %v97, 0.0
    %v100 = vld [vmem:[#allocation7] sm:$0xff]
    %v101 = vld [vmem:[#allocation7 + $0x8] sm:$0xff]
    %v102 = vld [vmem:[#allocation7 + $0x10] sm:$0xff]
    %v103 = vld [vmem:[#allocation7 + $0x18] sm:$0xff]
    %v104 = vld [vmem:[#allocation7 + $0x20] sm:$0xff]
    %v105 = vld [vmem:[#allocation7 + $0x28] sm:$0xff]
    %v106 = vld [vmem:[#allocation7 + $0x30] sm:$0xff]
    %v107 = vld [vmem:[#allocation7 + $0x38] sm:$0xff]
    %v108 = vld [vmem:[#allocation7 + $0x40] sm:$0xff]
    %v109 = vld [vmem:[#allocation7 + $0x48] sm:$0xff]
    %v110 = vld [vmem:[#allocation7 + $0x50] sm:$0xff]
    %v111 = vld [vmem:[#allocation7 + $0x58] sm:$0xff]
    %v112 = vld [vmem:[#allocation7 + $0x60] sm:$0xff]
    %v113 = vld [vmem:[#allocation7 + $0x68] sm:$0xff]
    %v114 = vld [vmem:[#allocation7 + $0x70] sm:$0xff]
    %v115 = vld [vmem:[#allocation7 + $0x78] sm:$0xff]
    %v116 = vld [vmem:[%s4] sm:$0x1]
    %v118 = vperm.slane %v116, 0
    %120 = vmatpush.msra.mxu0 %v115
    %121 = vmatpush.msra.mxu0 %v114
    %122 = vmatpush.msra.mxu0 %v113
    %123 = vmatpush.msra.mxu0 %v112
    %124 = vmatpush.msra.mxu0 %v111
    %125 = vmatpush.msra.mxu0 %v110
    %126 = vmatpush.msra.mxu0 %v109
    %127 = vmatpush.msra.mxu0 %v108
    %128 = vmatpush.msra.mxu0 %v107
    %129 = vmatpush.msra.mxu0 %v106
    %130 = vmatpush.msra.mxu0 %v105
    %131 = vmatpush.msra.mxu0 %v104
    %132 = vmatpush.msra.mxu0 %v103
    %133 = vmatpush.msra.mxu0 %v102
    %134 = vmatpush.msra.mxu0 %v101
    %135 = vmatpush.msra.mxu0 %v100
    %136 = vmatmul.f32.gmra.mxu0 %v99
    %v137 = vpop.f32.mrf.mxu0
    %v138 = vadd.f32 %v118, %v137
    %139 = vdwg.mxu0
    %140 = vst [vmem:[#allocation8] sm:$0xff] %v138
    // Predicated region
    $region34: #{tpu_custom_call.1} parent=1 // pred_check
      _
    $region35: #{tpu_custom_call.1} parent=1 // pred_check_branch
      %142 = sbr.rel (0) target = $region37
    $region36: #{tpu_custom_call.1} parent=1 // pred_region
      %144 = vsyncadd [#allocation4], 0
      %s146 = sshll.u32 [#allocation8], 4
      %s147 = int_to_ptr.vmem [resolvable:$true] %s146
      %s148 = sshll.u32 %s5, 4
      %s149 = int_to_ptr.hbm [resolvable:$true] %s148
      %151 = dma.vmem_to_hbm [thread:$0]  %s147, 128, %s149, [#allocation4]
    $region37: #{tpu_custom_call.1} parent=1 // pred_fallthru
      _
    // Predicated region
    $region38: #{tpu_custom_call.1} parent=1 // pred_check
      _
    $region39: #{tpu_custom_call.1} parent=1 // pred_check_branch
      %153 = sbr.rel (0) target = $region41
    $region40: #{tpu_custom_call.1} parent=1 // pred_region
      %155 = dma.done [#allocation4], 128
    $region41: #{tpu_custom_call.1} parent=1 // pred_fallthru
      _
    %156 = vsyncpa [#allocation3], 1
    %157 = vsyncpa [#allocation6], 1
    %158 = vsyncpa [#allocation4], 1

</llo_original>
